<compile_context>
chip_gen: v6e
topology: v6e:2x2x1
jax: 0.10.0
libtpu: 0.0.40
codegen_flags: <defaults>
</compile_context>

<pallas_src>
import functools
import math
from typing import NamedTuple

import numpy as np
import jax
import jax.numpy as jnp
from jax.experimental import pallas as pl
from jax.experimental.pallas import tpu as pltpu


LANE = 128  # TPU lane width; latent dim and tiles pad to multiples of this.


def _round_up(x, m):
    return (x + m - 1) // m * m


class LightGCNState(NamedTuple):
    """Device-resident, reusable (prepared once, outside the jitted forward)."""
    a_bf16: jax.Array    # (Np, Np) bf16 padded normalized adjacency
    e0_pad: jax.Array    # (Np, Dp) f32 padded initial embedding
    col_ids: jax.Array   # (n_row_tiles * max_tiles,) int32 nonzero col-tile ids
    counts: jax.Array    # (n_row_tiles,) int32 number of nonzero col tiles


class LightGCNMeta(NamedTuple):
    """Static (hashable) kernel configuration."""
    n: int
    d: int
    n_pad: int
    d_pad: int
    tm: int
    tk: int
    max_tiles: int
    s_resident: bool


# ---------------------------------------------------------------------------
# Pallas kernel: one LightGCN propagation step in Horner form
#     out = scale * (A @ S + E0)
# Grid = (row tiles i, nonzero-column-tile slots k); f32 accumulator scratch.
# ---------------------------------------------------------------------------
def _lightgcn_layer_kernel(cid_ref, cnt_ref, a_ref, s_ref, e0_ref, out_ref,
                           acc_ref, *, scale, tk, max_tiles, s_resident):
    i = pl.program_id(0)
    k = pl.program_id(1)

    @pl.when(k == 0)
    def _init():
        acc_ref[...] = jnp.zeros_like(acc_ref)

    # Only the first cnt_ref[i] slots hold real (nonzero) A tiles; padded
    # slots repeat the previous block index (no DMA) and skip the MXU work.
    @pl.when(k < cnt_ref[i])
    def _accumulate():
        if s_resident:
            cid = cid_ref[i * max_tiles + k]
            off = pl.multiple_of(cid * tk, tk)          # aligned dynamic slice
            s_tile = s_ref[pl.ds(off, tk), :]
        else:
            s_tile = s_ref[...]
        acc_ref[...] += jnp.dot(a_ref[...], s_tile,
                                preferred_element_type=jnp.float32)

    @pl.when(k == pl.num_programs(1) - 1)
    def _finalize():
        out_ref[...] = ((acc_ref[...] + e0_ref[...]) * scale).astype(out_ref.dtype)


def _layer_call(a_bf16, s, e0_f32, col_ids, counts, *, meta, scale, out_dtype):
    Np, Dp = meta.n_pad, meta.d_pad
    tm, tk, mt = meta.tm, meta.tk, meta.max_tiles
    s_resident = meta.s_resident
    n_row_tiles = Np // tm

    kernel = functools.partial(_lightgcn_layer_kernel, scale=scale, tk=tk,
                               max_tiles=mt, s_resident=s_resident)

    # Data-dependent A index map: fetch only nonzero (tm, tk) tiles.
    def a_map(i, k, cid, cnt):
        return (i, cid[i * mt + k])

    if s_resident:
        # Whole S operand lives in VMEM; index map is constant -> one DMA.
        s_spec = pl.BlockSpec((Np, Dp), lambda i, k, cid, cnt: (0, 0))
        s_bytes = Np * Dp * 2
    else:
        s_spec = pl.BlockSpec((tk, Dp),
                              lambda i, k, cid, cnt: (cid[i * mt + k], 0))
        s_bytes = tk * Dp * 2

    # VMEM budget (no double counting): 2 buffers per blocked operand + acc.
    need = (2 * tm * tk * 2        # A tiles, bf16, double-buffered
            + 2 * s_bytes          # S, bf16, double-buffered
            + 2 * tm * Dp * 4      # E0 row tiles, f32
            + 2 * tm * Dp * 4      # out tiles (worst case f32)
            + tm * Dp * 4)         # f32 accumulator scratch
    vmem_limit = int(min(max(need + (4 << 20), 16 << 20), 48 << 20))

    return pl.pallas_call(
        kernel,
        out_shape=jax.ShapeDtypeStruct((Np, Dp), out_dtype),
        grid_spec=pltpu.PrefetchScalarGridSpec(
            num_scalar_prefetch=2,            # col_ids, counts -> SMEM
            grid=(n_row_tiles, mt),
            in_specs=[
                pl.BlockSpec((tm, tk), a_map),                          # A tile
                s_spec,                                                 # S
                pl.BlockSpec((tm, Dp), lambda i, k, cid, cnt: (i, 0)),  # E0 tile
            ],
            out_specs=pl.BlockSpec((tm, Dp), lambda i, k, cid, cnt: (i, 0)),
            scratch_shapes=[pltpu.VMEM((tm, Dp), jnp.float32)],
        ),
        compiler_params=pltpu.CompilerParams(
            dimension_semantics=("parallel", "arbitrary"),
            vmem_limit_bytes=vmem_limit,
        ),
    )(col_ids, counts, a_bf16, s, e0_f32)


def lightgcn_propagate(state, meta, n_layers):
    """mean([E0, A E0, ..., A^L E0]) via Horner: S_{l+1} = A S_l + E0,
    with the final 1/(L+1) fused into the last layer's kernel."""
    if n_layers == 0:
        return state.e0_pad[:meta.n, :meta.d]

    s = state.e0_pad.astype(jnp.bfloat16)      # S_0 = E0 (bf16 into the MXU)
    for layer in range(n_layers):
        last = layer == n_layers - 1
        s = _layer_call(
            state.a_bf16, s, state.e0_pad, state.col_ids, state.counts,
            meta=meta,
            scale=(1.0 / float(n_layers + 1)) if last else 1.0,
            out_dtype=jnp.float32 if last else jnp.bfloat16)
    return s[:meta.n, :meta.d]                 # f32 mean embedding


# ---------------------------------------------------------------------------
# One-time host-side preparation (hoisted out of the jitted forward):
# pad + bf16-cast A, pad E0, build block-nonzero metadata for A.
# ---------------------------------------------------------------------------
def prepare_lightgcn(norm_adj, e0, *, tm=256, tk=512):
    norm_adj = np.asarray(norm_adj, dtype=np.float32)
    e0 = np.asarray(e0, dtype=np.float32)
    N = int(norm_adj.shape[0])
    D = int(e0.shape[1])

    n128 = _round_up(N, LANE)
    # Clamp tiles down (keep power-of-two multiples of 128) for tiny graphs.
    while tm > LANE and tm > n128:
        tm //= 2
    while tk > LANE and tk > n128:
        tk //= 2
    # v7x megacore: keep >= 2 row tiles on the "parallel" axis when possible.
    while tm > LANE and _round_up(N, tm * tk // math.gcd(tm, tk)) // tm < 2:
        tm //= 2

    lcm = tm * tk // math.gcd(tm, tk)
    Np = _round_up(N, lcm)           # divisible by both tm and tk (no dropped rows)
    Dp = _round_up(D, LANE)          # lane-dense last dim

    a_pad = np.zeros((Np, Np), np.float32)
    a_pad[:N, :N] = norm_adj
    e0_pad = np.zeros((Np, Dp), np.float32)
    e0_pad[:N, :D] = e0

    # Block-nonzero metadata: which (tm, tk) tiles of A contain any edge.
    n_row_tiles, n_col_tiles = Np // tm, Np // tk
    nz = (np.abs(a_pad.reshape(n_row_tiles, tm, n_col_tiles, tk)) > 0).any(axis=(1, 3))
    counts = nz.sum(axis=1).astype(np.int32)
    max_tiles = int(max(int(counts.max()), 1))
    col_ids = np.zeros((n_row_tiles, max_tiles), np.int32)
    for i in range(n_row_tiles):
        ids = np.flatnonzero(nz[i]).astype(np.int32)
        if ids.size:
            col_ids[i, :ids.size] = ids
            col_ids[i, ids.size:] = ids[-1]   # repeat -> same block idx -> no DMA
    col_ids = col_ids.reshape(-1)

    # Resident-S gate: 2 buffers of the full S must stay well under the
    # smallest (v7x) VMEM after tiles/accumulator/headroom.
    s_resident = bool(2 * Np * Dp * 2 <= (24 << 20))

    state = LightGCNState(
        a_bf16=jnp.asarray(a_pad, dtype=jnp.bfloat16),
        e0_pad=jnp.asarray(e0_pad, dtype=jnp.float32),
        col_ids=jnp.asarray(col_ids, dtype=jnp.int32),
        counts=jnp.asarray(counts, dtype=jnp.int32),
    )
    meta = LightGCNMeta(n=N, d=D, n_pad=Np, d_pad=Dp, tm=int(tm), tk=int(tk),
                        max_tiles=max_tiles, s_resident=s_resident)
    return state, meta


# ---------------------------------------------------------------------------
# Glue: dense normalized adjacency (A_tilde), xavier-uniform E0, forward.
# ---------------------------------------------------------------------------
def build_norm_adj(user_idx, item_idx, n_users, n_items):
    """Dense equivalent of LightGCN.get_a_tilda() (numpy, host-side)."""
    N = n_users + n_items
    adj = np.zeros((N, N), dtype=np.float32)
    adj[user_idx, n_users + item_idx] = 1.0
    adj[n_users + item_idx, user_idx] = 1.0
    row_sum = adj.sum(axis=1)
    d_inv = np.power(row_sum + 1e-9, -0.5)
    d_inv[np.isinf(d_inv)] = 0.0
    return d_inv[:, None] * adj * d_inv[None, :]


def init_e0(key, n_users, n_items, latent_dim):
    """xavier_uniform_ on an (N, D) embedding weight."""
    N = n_users + n_items
    bound = np.sqrt(6.0 / (N + latent_dim))
    return jax.random.uniform(
        key, (N, latent_dim), dtype=jnp.float32, minval=-bound, maxval=bound)


@functools.partial(jax.jit, static_argnames=("meta", "n_users", "n_layers"))
def lightgcn_forward(state, users, pos_items, neg_items, *,
                     meta, n_users, n_layers):
    mean_emb = lightgcn_propagate(state, meta, n_layers)   # Pallas hot path
    e0 = state.e0_pad[:meta.n, :meta.d]
    final_user_embed = mean_emb[:n_users]
    final_item_embed = mean_emb[n_users:]
    initial_user_embed = e0[:n_users]
    initial_item_embed = e0[n_users:]
    users_emb = final_user_embed[users]
    pos_emb = final_item_embed[pos_items]
    neg_emb = final_item_embed[neg_items]
    user_emb0 = initial_user_embed[users]
    pos_emb0 = initial_item_embed[pos_items]
    neg_emb0 = initial_item_embed[neg_items]
    return users_emb, pos_emb, neg_emb, user_emb0, pos_emb0, neg_emb0


if __name__ == "__main__":
    # Small deterministic synthetic setup.
    n_users, n_items = 48, 80          # N = 128
    latent_dim = 32
    n_layers = 3
    n_edges = 200
    batch = 8

    key = jax.random.PRNGKey(0)
    k_e0, k_u, k_i, k_batch = jax.random.split(key, 4)

    # Random interaction edges (data['user_idx'], data['item_idx']).
    user_idx = np.asarray(jax.random.randint(k_u, (n_edges,), 0, n_users))
    item_idx = np.asarray(jax.random.randint(k_i, (n_edges,), 0, n_items))

    norm_adj = build_norm_adj(user_idx, item_idx, n_users, n_items)
    e0 = init_e0(k_e0, n_users, n_items, latent_dim)

    # One-time prep (padding, bf16 cast, block-sparsity metadata) -- hoisted
    # out of the jitted forward path.
    state, meta = prepare_lightgcn(norm_adj, e0)

    kb1, kb2, kb3 = jax.random.split(k_batch, 3)
    users = jax.random.randint(kb1, (batch,), 0, n_users)
    pos_items = jax.random.randint(kb2, (batch,), 0, n_items)
    neg_items = jax.random.randint(kb3, (batch,), 0, n_items)

    outs = lightgcn_forward(state, users, pos_items, neg_items,
                            meta=meta, n_users=n_users, n_layers=n_layers)
    outs = jax.block_until_ready(outs)

    # Sanity check against a pure-numpy f32 reference of the propagation.
    # (Kernel feeds bf16 operands to the MXU -> loosened tolerance.)
    e0_np = np.asarray(e0, np.float32)
    e = e0_np.copy()
    acc = e0_np.copy()
    for _ in range(n_layers):
        e = norm_adj @ e
        acc = acc + e
    mean_ref = acc / (n_layers + 1)

    mean_pallas = np.asarray(jax.block_until_ready(
        lightgcn_propagate(state, meta, n_layers)))
    np.testing.assert_allclose(mean_pallas, mean_ref, rtol=5e-2, atol=5e-3)

    assert outs[0].shape == (batch, latent_dim)
    assert outs[3].shape == (batch, latent_dim)
    print("KERNEL_OK")
</pallas_src>

<mosaic_0001>
module attributes {stable_mosaic.version = 11 : i64} {
  func.func @_lightgcn_layer_kernel(%arg0: i32, %arg1: i32, %arg2: memref<1xi32, #tpu.memory_space<smem>>, %arg3: memref<1xi32, #tpu.memory_space<smem>>, %arg4: memref<128x128xbf16, #tpu.memory_space<vmem>>, %arg5: memref<128x128xbf16, #tpu.memory_space<vmem>>, %arg6: memref<128x128xf32, #tpu.memory_space<vmem>>, %arg7: memref<128x128xf32, #tpu.memory_space<vmem>>, %arg8: memref<128x128xf32, #tpu.memory_space<vmem>>) attributes {dimension_semantics = [#tpu.dimension_semantics<parallel>, #tpu.dimension_semantics<arbitrary>], iteration_bounds = array<i64: 1, 1>, scalar_prefetch = 2 : i64, scratch_operands = 1 : i64, tpu.core_type = #tpu.core_type<tc>, window_params = [{transform_indices = @transform_0, window_bounds = array<i64: 128, 128>}, {pipeline_mode = #tpu.pipeline_mode<synchronous>, transform_indices = @transform_1, window_bounds = array<i64: 128, 128>}, {transform_indices = @transform_2, window_bounds = array<i64: 128, 128>}, {transform_indices = @transform_3, window_bounds = array<i64: 128, 128>}]} {
    %c0_i32 = arith.constant 0 : i32
    %0 = arith.cmpi eq, %arg1, %c0_i32 : i32
    %1 = arith.extui %0 : i1 to i32
    %c0_i32_0 = arith.constant 0 : i32
    %2 = arith.cmpi ne, %1, %c0_i32_0 : i32
    scf.if %2 {
      %cst = arith.constant 0.000000e+00 : f32
      %11 = vector.broadcast %cst : f32 to vector<128x128xf32>
      %c0 = arith.constant 0 : index
      %c0_4 = arith.constant 0 : index
      %12 = vector.load %arg8[%c0, %c0_4] : memref<128x128xf32, #tpu.memory_space<vmem>>, vector<128x128xf32>
      tpu.vector_store %arg8[%c0, %c0_4], %11 {strides = array<i32>} : memref<128x128xf32, #tpu.memory_space<vmem>>, vector<128x128xf32>,
    } else {
    }
    %3 = arith.index_cast %arg0 : i32 to index
    %4 = memref.load %arg3[%3] : memref<1xi32, #tpu.memory_space<smem>>
    %5 = arith.cmpi slt, %arg1, %4 : i32
    %6 = arith.extui %5 : i1 to i32
    %c0_i32_1 = arith.constant 0 : i32
    %7 = arith.cmpi ne, %6, %c0_i32_1 : i32
    scf.if %7 {
      %c1_i32 = arith.constant 1 : i32
      %11 = arith.muli %arg0, %c1_i32 : i32
      %12 = arith.addi %11, %arg1 : i32
      %13 = arith.index_cast %12 : i32 to index
      %14 = memref.load %arg2[%13] : memref<1xi32, #tpu.memory_space<smem>>
      %c128_i32 = arith.constant 128 : i32
      %15 = arith.muli %14, %c128_i32 : i32
      %16 = tpu.assume_multiple %15, 128 : i32
      %17 = arith.index_cast %16 : i32 to index
      %c0 = arith.constant 0 : index
      %18 = vector.load %arg5[%17, %c0] : memref<128x128xbf16, #tpu.memory_space<vmem>>, vector<128x128xbf16>
      %c0_4 = arith.constant 0 : index
      %c0_5 = arith.constant 0 : index
      %19 = vector.load %arg8[%c0_4, %c0_5] : memref<128x128xf32, #tpu.memory_space<vmem>>, vector<128x128xf32>
      %c0_6 = arith.constant 0 : index
      %c0_7 = arith.constant 0 : index
      %20 = vector.load %arg4[%c0_6, %c0_7] : memref<128x128xbf16, #tpu.memory_space<vmem>>, vector<128x128xbf16>
      %cst = arith.constant dense<0.000000e+00> : vector<128x128xf32>
      %21 = tpu.matmul %20, %18, %cst {dimension_numbers = #tpu.dot_dimension_numbers<[1], [0], [0], [1], [0, 0, 1, 1], [], []>} : vector<128x128xbf16>, vector<128x128xbf16>, vector<128x128xf32> -> vector<128x128xf32>
      %22 = arith.addf %19, %21 : vector<128x128xf32>
      %c0_8 = arith.constant 0 : index
      %c0_9 = arith.constant 0 : index
      %23 = vector.load %arg8[%c0_8, %c0_9] : memref<128x128xf32, #tpu.memory_space<vmem>>, vector<128x128xf32>
      tpu.vector_store %arg8[%c0_8, %c0_9], %22 {strides = array<i32>} : memref<128x128xf32, #tpu.memory_space<vmem>>, vector<128x128xf32>,
    } else {
    }
    %c0_i32_2 = arith.constant 0 : i32
    %8 = arith.cmpi eq, %arg1, %c0_i32_2 : i32
    %9 = arith.extui %8 : i1 to i32
    %c0_i32_3 = arith.constant 0 : i32
    %10 = arith.cmpi ne, %9, %c0_i32_3 : i32
    scf.if %10 {
      %c0 = arith.constant 0 : index
      %c0_4 = arith.constant 0 : index
      %11 = vector.load %arg8[%c0, %c0_4] : memref<128x128xf32, #tpu.memory_space<vmem>>, vector<128x128xf32>
      %c0_5 = arith.constant 0 : index
      %c0_6 = arith.constant 0 : index
      %12 = vector.load %arg6[%c0_5, %c0_6] : memref<128x128xf32, #tpu.memory_space<vmem>>, vector<128x128xf32>
      %13 = arith.addf %11, %12 : vector<128x128xf32>
      %cst = arith.constant 2.500000e-01 : f32
      %14 = vector.broadcast %cst : f32 to vector<128x128xf32>
      %15 = arith.mulf %13, %14 : vector<128x128xf32>
      %c0_7 = arith.constant 0 : index
      %c0_8 = arith.constant 0 : index
      %16 = vector.load %arg7[%c0_7, %c0_8] : memref<128x128xf32, #tpu.memory_space<vmem>>, vector<128x128xf32>
      tpu.vector_store %arg7[%c0_7, %c0_8], %15 {strides = array<i32>} : memref<128x128xf32, #tpu.memory_space<vmem>>, vector<128x128xf32>,
    } else {
    }
    return
  }
  func.func @transform_0(%arg0: i32, %arg1: i32, %arg2: memref<1xi32, #tpu.memory_space<smem>>, %arg3: memref<1xi32, #tpu.memory_space<smem>>) -> (i32, i32) {
    %c1_i32 = arith.constant 1 : i32
    %0 = arith.muli %arg0, %c1_i32 : i32
    %1 = arith.addi %0, %arg1 : i32
    %2 = arith.index_cast %1 : i32 to index
    %3 = memref.load %arg2[%2] : memref<1xi32, #tpu.memory_space<smem>>
    %c0_i32 = arith.constant 0 : i32
    return %arg0, %3 : i32, i32
  }
  func.func @transform_1(%arg0: i32, %arg1: i32, %arg2: memref<1xi32, #tpu.memory_space<smem>>, %arg3: memref<1xi32, #tpu.memory_space<smem>>) -> (i32, i32) {
    %c0_i32 = arith.constant 0 : i32
    %c0_i32_0 = arith.constant 0 : i32
    %c0_i32_1 = arith.constant 0 : i32
    return %c0_i32, %c0_i32_0 : i32, i32
  }
  func.func @transform_2(%arg0: i32, %arg1: i32, %arg2: memref<1xi32, #tpu.memory_space<smem>>, %arg3: memref<1xi32, #tpu.memory_space<smem>>) -> (i32, i32) {
    %c0_i32 = arith.constant 0 : i32
    %c0_i32_0 = arith.constant 0 : i32
    return %arg0, %c0_i32 : i32, i32
  }
  func.func @transform_3(%arg0: i32, %arg1: i32, %arg2: memref<1xi32, #tpu.memory_space<smem>>, %arg3: memref<1xi32, #tpu.memory_space<smem>>) -> (i32, i32) {
    %c0_i32 = arith.constant 0 : i32
    %c0_i32_0 = arith.constant 0 : i32
    return %arg0, %c0_i32 : i32, i32
  }
}

module attributes {stable_mosaic.version = 11 : i64} {
  func.func @_lightgcn_layer_kernel(%arg0: i32, %arg1: i32, %arg2: memref<1xi32, #tpu.memory_space<smem>>, %arg3: memref<1xi32, #tpu.memory_space<smem>>, %arg4: memref<128x128xbf16, #tpu.memory_space<vmem>>, %arg5: memref<128x128xbf16, #tpu.memory_space<vmem>>, %arg6: memref<128x128xf32, #tpu.memory_space<vmem>>, %arg7: memref<128x128xbf16, #tpu.memory_space<vmem>>, %arg8: memref<128x128xf32, #tpu.memory_space<vmem>>) attributes {dimension_semantics = [#tpu.dimension_semantics<parallel>, #tpu.dimension_semantics<arbitrary>], iteration_bounds = array<i64: 1, 1>, scalar_prefetch = 2 : i64, scratch_operands = 1 : i64, tpu.core_type = #tpu.core_type<tc>, window_params = [{transform_indices = @transform_0, window_bounds = array<i64: 128, 128>}, {pipeline_mode = #tpu.pipeline_mode<synchronous>, transform_indices = @transform_1, window_bounds = array<i64: 128, 128>}, {transform_indices = @transform_2, window_bounds = array<i64: 128, 128>}, {transform_indices = @transform_3, window_bounds = array<i64: 128, 128>}]} {
    %c0_i32 = arith.constant 0 : i32
    %0 = arith.cmpi eq, %arg1, %c0_i32 : i32
    %1 = arith.extui %0 : i1 to i32
    %c0_i32_0 = arith.constant 0 : i32
    %2 = arith.cmpi ne, %1, %c0_i32_0 : i32
    scf.if %2 {
      %cst = arith.constant 0.000000e+00 : f32
      %11 = vector.broadcast %cst : f32 to vector<128x128xf32>
      %c0 = arith.constant 0 : index
      %c0_4 = arith.constant 0 : index
      %12 = vector.load %arg8[%c0, %c0_4] : memref<128x128xf32, #tpu.memory_space<vmem>>, vector<128x128xf32>
      tpu.vector_store %arg8[%c0, %c0_4], %11 {strides = array<i32>} : memref<128x128xf32, #tpu.memory_space<vmem>>, vector<128x128xf32>,
    } else {
    }
    %3 = arith.index_cast %arg0 : i32 to index
    %4 = memref.load %arg3[%3] : memref<1xi32, #tpu.memory_space<smem>>
    %5 = arith.cmpi slt, %arg1, %4 : i32
    %6 = arith.extui %5 : i1 to i32
    %c0_i32_1 = arith.constant 0 : i32
    %7 = arith.cmpi ne, %6, %c0_i32_1 : i32
    scf.if %7 {
      %c1_i32 = arith.constant 1 : i32
      %11 = arith.muli %arg0, %c1_i32 : i32
      %12 = arith.addi %11, %arg1 : i32
      %13 = arith.index_cast %12 : i32 to index
      %14 = memref.load %arg2[%13] : memref<1xi32, #tpu.memory_space<smem>>
      %c128_i32 = arith.constant 128 : i32
      %15 = arith.muli %14, %c128_i32 : i32
      %16 = tpu.assume_multiple %15, 128 : i32
      %17 = arith.index_cast %16 : i32 to index
      %c0 = arith.constant 0 : index
      %18 = vector.load %arg5[%17, %c0] : memref<128x128xbf16, #tpu.memory_space<vmem>>, vector<128x128xbf16>
      %c0_4 = arith.constant 0 : index
      %c0_5 = arith.constant 0 : index
      %19 = vector.load %arg8[%c0_4, %c0_5] : memref<128x128xf32, #tpu.memory_space<vmem>>, vector<128x128xf32>
      %c0_6 = arith.constant 0 : index
      %c0_7 = arith.constant 0 : index
      %20 = vector.load %arg4[%c0_6, %c0_7] : memref<128x128xbf16, #tpu.memory_space<vmem>>, vector<128x128xbf16>
      %cst = arith.constant dense<0.000000e+00> : vector<128x128xf32>
      %21 = tpu.matmul %20, %18, %cst {dimension_numbers = #tpu.dot_dimension_numbers<[1], [0], [0], [1], [0, 0, 1, 1], [], []>} : vector<128x128xbf16>, vector<128x128xbf16>, vector<128x128xf32> -> vector<128x128xf32>
      %22 = arith.addf %19, %21 : vector<128x128xf32>
      %c0_8 = arith.constant 0 : index
      %c0_9 = arith.constant 0 : index
      %23 = vector.load %arg8[%c0_8, %c0_9] : memref<128x128xf32, #tpu.memory_space<vmem>>, vector<128x128xf32>
      tpu.vector_store %arg8[%c0_8, %c0_9], %22 {strides = array<i32>} : memref<128x128xf32, #tpu.memory_space<vmem>>, vector<128x128xf32>,
    } else {
    }
    %c0_i32_2 = arith.constant 0 : i32
    %8 = arith.cmpi eq, %arg1, %c0_i32_2 : i32
    %9 = arith.extui %8 : i1 to i32
    %c0_i32_3 = arith.constant 0 : i32
    %10 = arith.cmpi ne, %9, %c0_i32_3 : i32
    scf.if %10 {
      %c0 = arith.constant 0 : index
      %c0_4 = arith.constant 0 : index
      %11 = vector.load %arg8[%c0, %c0_4] : memref<128x128xf32, #tpu.memory_space<vmem>>, vector<128x128xf32>
      %c0_5 = arith.constant 0 : index
      %c0_6 = arith.constant 0 : index
      %12 = vector.load %arg6[%c0_5, %c0_6] : memref<128x128xf32, #tpu.memory_space<vmem>>, vector<128x128xf32>
      %13 = arith.addf %11, %12 : vector<128x128xf32>
      %cst = arith.constant 1.000000e+00 : f32
      %14 = vector.broadcast %cst : f32 to vector<128x128xf32>
      %15 = arith.mulf %13, %14 : vector<128x128xf32>
      %16 = arith.truncf %15 : vector<128x128xf32> to vector<128x128xbf16>
      %c0_7 = arith.constant 0 : index
      %c0_8 = arith.constant 0 : index
      %17 = vector.load %arg7[%c0_7, %c0_8] : memref<128x128xbf16, #tpu.memory_space<vmem>>, vector<128x128xbf16>
      tpu.vector_store %arg7[%c0_7, %c0_8], %16 {strides = array<i32>} : memref<128x128xbf16, #tpu.memory_space<vmem>>, vector<128x128xbf16>,
    } else {
    }
    return
  }
  func.func @transform_0(%arg0: i32, %arg1: i32, %arg2: memref<1xi32, #tpu.memory_space<smem>>, %arg3: memref<1xi32, #tpu.memory_space<smem>>) -> (i32, i32) {
    %c1_i32 = arith.constant 1 : i32
    %0 = arith.muli %arg0, %c1_i32 : i32
    %1 = arith.addi %0, %arg1 : i32
    %2 = arith.index_cast %1 : i32 to index
    %3 = memref.load %arg2[%2] : memref<1xi32, #tpu.memory_space<smem>>
    %c0_i32 = arith.constant 0 : i32
    return %arg0, %3 : i32, i32
  }
  func.func @transform_1(%arg0: i32, %arg1: i32, %arg2: memref<1xi32, #tpu.memory_space<smem>>, %arg3: memref<1xi32, #tpu.memory_space<smem>>) -> (i32, i32) {
    %c0_i32 = arith.constant 0 : i32
    %c0_i32_0 = arith.constant 0 : i32
    %c0_i32_1 = arith.constant 0 : i32
    return %c0_i32, %c0_i32_0 : i32, i32
  }
  func.func @transform_2(%arg0: i32, %arg1: i32, %arg2: memref<1xi32, #tpu.memory_space<smem>>, %arg3: memref<1xi32, #tpu.memory_space<smem>>) -> (i32, i32) {
    %c0_i32 = arith.constant 0 : i32
    %c0_i32_0 = arith.constant 0 : i32
    return %arg0, %c0_i32 : i32, i32
  }
  func.func @transform_3(%arg0: i32, %arg1: i32, %arg2: memref<1xi32, #tpu.memory_space<smem>>, %arg3: memref<1xi32, #tpu.memory_space<smem>>) -> (i32, i32) {
    %c0_i32 = arith.constant 0 : i32
    %c0_i32_0 = arith.constant 0 : i32
    return %arg0, %c0_i32 : i32, i32
  }
}

</mosaic_0001>

<llo_original>
// kernel: lightgcn_forward.5
$region0: #{lightgcn_forward.5}
  #allocation0 [shape = 'u32[]', space=smem, size = 0x4, offset = 0x4, fixed_abs, tag = 'smem constant byte address 0x4 - core index']
  #allocation1 [shape = 'u32[144,128]{1,0:T(1,128)}', space=vmem, size = 0x12000, scoped, tag = 'internal scratch']
  #allocation2 [shape = 'f32[128,128]{1,0:T(8,128)}', space=vmem, size = 0x10000, scoped, tag = 'scratch operand']
  #allocation3 [shape = 's32[1]{0}', space=sflag, size = 0x4, scoped, tag = 'scoped memory for lightgcn_forward.5']
  #allocation4 [shape = 's32[1]{0:T(128)S(6)}', space=smem, size = 0x200, scoped, tag = 'prefetched SMEM operand 0']
  #allocation5 [shape = 's32[1]{0:T(128)S(6)}', space=smem, size = 0x200, scoped, tag = 'prefetched SMEM operand 1']
  %s0 = inlined_call_operand.<no memory space> [shape: s32[1], index: 0, kind: input, shape index: {}]
  %s1 = inlined_call_operand.<no memory space> [shape: s32[1], index: 1, kind: input, shape index: {}]
  %s2 = inlined_call_operand.vmem [shape: bf16[128,128], index: 2, kind: input, shape index: {}]
  %s3 = inlined_call_operand.vmem [shape: bf16[128,128], index: 3, kind: input, shape index: {}]
  %s4 = inlined_call_operand.vmem [shape: f32[128,128], index: 4, kind: input, shape index: {}]
  %s5 = inlined_call_operand.vmem [shape: f32[128,128], index: 5, kind: output, shape index: {}]
  %s6 = sld [smem:[#allocation0]]
  $region34: #{lightgcn_forward.5} parent=0
    _
  %s8 = ssub.s32 1, %s6
  %s9 = scalar_select 0, %s8, %s6
  %10 = sst [smem:[#allocation4]] %s0
  %11 = sst [smem:[#allocation5]] %s1
  // Predicated region
  $region2: #{lightgcn_forward.5} parent=0 // pred_check
    _
  $region3: #{lightgcn_forward.5} parent=0 // pred_check_branch
    %13 = sbr.rel (0) target = $region5
  $region4: #{lightgcn_forward.5} parent=0 // pred_region
    %s14 = sadd.s32 0, 0
    %s15 = sld [smem:[#allocation4 + %s14]]
    %p16 = scmp.lt.s32.totalorder %s15, 0
    %s17 = scalar_select %p16, %s15, 0
    %s18 = smul.addr %s17, 4
    %s19 = scalar_lea.vmem %s2, %s18
    %s20 = sadd.s32 0, 0
    %s21 = sld [smem:[#allocation4 + %s20]]
  $region5: #{lightgcn_forward.5} parent=0 // pred_fallthru
    _
  // Predicated region
  $region6: #{lightgcn_forward.5} parent=0 // pred_check
    _
  $region7: #{lightgcn_forward.5} parent=0 // pred_check_branch
    %23 = sbr.rel (0) target = $region9
  $region8: #{lightgcn_forward.5} parent=0 // pred_region
    _
  $region9: #{lightgcn_forward.5} parent=0 // pred_fallthru
    _
  // Predicated region
  $region10: #{lightgcn_forward.5} parent=0 // pred_check
    _
  $region11: #{lightgcn_forward.5} parent=0 // pred_check_branch
    %25 = sbr.rel (0) target = $region13
  $region12: #{lightgcn_forward.5} parent=0 // pred_region
    _
  $region13: #{lightgcn_forward.5} parent=0 // pred_fallthru
    _
  %s26 = sadd.s32 0, 0
  %s27 = sld [smem:[#allocation4 + %s26]]
  %p28 = scmp.lt.s32.totalorder %s27, 0
  %s29 = scalar_select %p28, %s27, 0
  %s30 = smul.addr %s29, 4
  %s31 = scalar_lea.vmem %s2, %s30
  %s32 = sadd.s32 0, 0
  %s33 = sld [smem:[#allocation4 + %s32]]
  %p34 = scmp.lt.s32.totalorder %s33, 0
  %s35 = scalar_select %p34, %s33, 0
  %s36 = smul.addr %s35, 4
  %s37 = scalar_lea.vmem %s2, %s36
  %s38 = sadd.s32 0, 0
  %s39 = sld [smem:[#allocation4 + %s38]]
  %p41 = scmp.eq.s32.totalorder 0, 0
  // Predicated region
  $region14: #{lightgcn_forward.5} parent=0 // pred_check
    %p42 = pneg %p41
  $region15: #{lightgcn_forward.5} parent=0 // pred_check_branch
    %44 = sbr.rel (%p42) target = $region17
  $region16: #{lightgcn_forward.5} parent=0 // pred_region
    %45 = vst [vmem:[#allocation2] sm:$0xff] 0.0
    %46 = vst [vmem:[#allocation2 + $0x8] sm:$0xff] 0.0
    %47 = vst [vmem:[#allocation2 + $0x10] sm:$0xff] 0.0
    %48 = vst [vmem:[#allocation2 + $0x18] sm:$0xff] 0.0
    %49 = vst [vmem:[#allocation2 + $0x20] sm:$0xff] 0.0
    %50 = vst [vmem:[#allocation2 + $0x28] sm:$0xff] 0.0
    %51 = vst [vmem:[#allocation2 + $0x30] sm:$0xff] 0.0
    %52 = vst [vmem:[#allocation2 + $0x38] sm:$0xff] 0.0
    %53 = vst [vmem:[#allocation2 + $0x40] sm:$0xff] 0.0
    %54 = vst [vmem:[#allocation2 + $0x48] sm:$0xff] 0.0
    %55 = vst [vmem:[#allocation2 + $0x50] sm:$0xff] 0.0
    %56 = vst [vmem:[#allocation2 + $0x58] sm:$0xff] 0.0
    %57 = vst [vmem:[#allocation2 + $0x60] sm:$0xff] 0.0
    %58 = vst [vmem:[#allocation2 + $0x68] sm:$0xff] 0.0
    %59 = vst [vmem:[#allocation2 + $0x70] sm:$0xff] 0.0
    %60 = vst [vmem:[#allocation2 + $0x78] sm:$0xff] 0.0
  $region17: #{lightgcn_forward.5} parent=0 // pred_fallthru
    _
  %s61 = sld [smem:[#allocation5]]
  %p62 = scmp.lt.s32.totalorder 0, %s61
  // Predicated region
  $region18: #{lightgcn_forward.5} parent=0 // pred_check
    %p63 = pneg %p62
  $region19: #{lightgcn_forward.5} parent=0 // pred_check_branch
    %65 = sbr.rel (%p63) target = $region21
  $region20: #{lightgcn_forward.5} parent=0 // pred_region
    %s66 = sadd.s32 0, 0
    %s67 = sld [smem:[#allocation4 + %s66]]
    %s68 = smul.u32 %s67, 128
    %s69 = sshra.s32 %s68, 3
    %s70 = sand.u32 %s68, 7
    %s71 = smul.addr %s69, 4
    %s72 = scalar_lea.vmem %s3, %s71
    %v73 = vld [vmem:[%s72] sm:$0xf]
    %v74 = vld [vmem:[%s72 + $0x4] sm:$0xf]
    %v75 = vld [vmem:[%s72 + $0x8] sm:$0xf]
    %v76 = vld [vmem:[%s72 + $0xc] sm:$0xf]
    %v77 = vld [vmem:[%s72 + $0x10] sm:$0xf]
    %v78 = vld [vmem:[%s72 + $0x14] sm:$0xf]
    %v79 = vld [vmem:[%s72 + $0x18] sm:$0xf]
    %v80 = vld [vmem:[%s72 + $0x1c] sm:$0xf]
    %v81 = vld [vmem:[%s72 + $0x20] sm:$0xf]
    %v82 = vld [vmem:[%s72 + $0x24] sm:$0xf]
    %v83 = vld [vmem:[%s72 + $0x28] sm:$0xf]
    %v84 = vld [vmem:[%s72 + $0x2c] sm:$0xf]
    %v85 = vld [vmem:[%s72 + $0x30] sm:$0xf]
    %v86 = vld [vmem:[%s72 + $0x34] sm:$0xf]
    %v87 = vld [vmem:[%s72 + $0x38] sm:$0xf]
    %v88 = vld [vmem:[%s72 + $0x3c] sm:$0xf]
    %v89 = vld [vmem:[#allocation2] sm:$0xff]
    %v90 = vld [vmem:[#allocation2 + $0x8] sm:$0xff]
    %v91 = vld [vmem:[#allocation2 + $0x10] sm:$0xff]
    %v92 = vld [vmem:[#allocation2 + $0x18] sm:$0xff]
    %v93 = vld [vmem:[#allocation2 + $0x20] sm:$0xff]
    %v94 = vld [vmem:[#allocation2 + $0x28] sm:$0xff]
    %v95 = vld [vmem:[#allocation2 + $0x30] sm:$0xff]
    %v96 = vld [vmem:[#allocation2 + $0x38] sm:$0xff]
    %v97 = vld [vmem:[#allocation2 + $0x40] sm:$0xff]
    %v98 = vld [vmem:[#allocation2 + $0x48] sm:$0xff]
    %v99 = vld [vmem:[#allocation2 + $0x50] sm:$0xff]
    %v100 = vld [vmem:[#allocation2 + $0x58] sm:$0xff]
    %v101 = vld [vmem:[#allocation2 + $0x60] sm:$0xff]
    %v102 = vld [vmem:[#allocation2 + $0x68] sm:$0xff]
    %v103 = vld [vmem:[#allocation2 + $0x70] sm:$0xff]
    %v104 = vld [vmem:[#allocation2 + $0x78] sm:$0xff]
    %v105 = vld [vmem:[%s37] sm:$0xf]
    %v106 = vld [vmem:[%s37 + $0x4] sm:$0xf]
    %v107 = vld [vmem:[%s37 + $0x8] sm:$0xf]
    %v108 = vld [vmem:[%s37 + $0xc] sm:$0xf]
    %v109 = vld [vmem:[%s37 + $0x10] sm:$0xf]
    %v110 = vld [vmem:[%s37 + $0x14] sm:$0xf]
    %v111 = vld [vmem:[%s37 + $0x18] sm:$0xf]
    %v112 = vld [vmem:[%s37 + $0x1c] sm:$0xf]
    %v113 = vld [vmem:[%s37 + $0x20] sm:$0xf]
    %v114 = vld [vmem:[%s37 + $0x24] sm:$0xf]
    %v115 = vld [vmem:[%s37 + $0x28] sm:$0xf]
    %v116 = vld [vmem:[%s37 + $0x2c] sm:$0xf]
    %v117 = vld [vmem:[%s37 + $0x30] sm:$0xf]
    %v118 = vld [vmem:[%s37 + $0x34] sm:$0xf]
    %v119 = vld [vmem:[%s37 + $0x38] sm:$0xf]
    %v120 = vld [vmem:[%s37 + $0x3c] sm:$0xf]
    %v137 = vunpack.c.l.b16 %v105
    %v138 = vunpack.c.l.b16 %v106
    %v139 = vunpack.c.l.b16 %v107
    %v140 = vunpack.c.l.b16 %v108
    %v141 = vunpack.c.l.b16 %v109
    %v142 = vunpack.c.l.b16 %v110
    %v143 = vunpack.c.l.b16 %v111
    %v144 = vunpack.c.l.b16 %v112
    %v145 = vunpack.c.l.b16 %v113
    %v146 = vunpack.c.l.b16 %v114
    %v147 = vunpack.c.l.b16 %v115
    %v148 = vunpack.c.l.b16 %v116
    %v149 = vunpack.c.l.b16 %v117
    %v150 = vunpack.c.l.b16 %v118
    %v151 = vunpack.c.l.b16 %v119
    %v152 = vunpack.c.l.b16 %v120
    %v153 = vpack.c.b16 %v138, %v137
    %v154 = vpack.c.b16 %v140, %v139
    %v155 = vpack.c.b16 %v142, %v141
    %v156 = vpack.c.b16 %v144, %v143
    %v157 = vpack.c.b16 %v146, %v145
    %v158 = vpack.c.b16 %v148, %v147
    %v159 = vpack.c.b16 %v150, %v149
    %v160 = vpack.c.b16 %v152, %v151
    %v185 = vunpack.c.l.b16 %v73
    %v186 = vunpack.c.l.b16 %v74
    %v187 = vunpack.c.l.b16 %v75
    %v188 = vunpack.c.l.b16 %v76
    %v189 = vunpack.c.l.b16 %v77
    %v190 = vunpack.c.l.b16 %v78
    %v191 = vunpack.c.l.b16 %v79
    %v192 = vunpack.c.l.b16 %v80
    %v193 = vunpack.c.l.b16 %v81
    %v194 = vunpack.c.l.b16 %v82
    %v195 = vunpack.c.l.b16 %v83
    %v196 = vunpack.c.l.b16 %v84
    %v197 = vunpack.c.l.b16 %v85
    %v198 = vunpack.c.l.b16 %v86
    %v199 = vunpack.c.l.b16 %v87
    %v200 = vunpack.c.l.b16 %v88
    %v201 = vpack.c.b16 %v186, %v185
    %v202 = vpack.c.b16 %v188, %v187
    %v203 = vpack.c.b16 %v190, %v189
    %v204 = vpack.c.b16 %v192, %v191
    %v205 = vpack.c.b16 %v194, %v193
    %v206 = vpack.c.b16 %v196, %v195
    %v207 = vpack.c.b16 %v198, %v197
    %v208 = vpack.c.b16 %v200, %v199
    %217 = vmatprep.subr.bf16.mxu0 0
    %218 = vmatpush1.bf16.msra.mxu0 %v208
    %219 = vmatprep.subr.bf16.mxu0 0
    %220 = vmatpush1.bf16.msra.mxu0 %v207
    %221 = vmatprep.subr.bf16.mxu0 0
    %222 = vmatpush1.bf16.msra.mxu0 %v206
    %223 = vmatprep.subr.bf16.mxu0 0
    %224 = vmatpush1.bf16.msra.mxu0 %v205
    %225 = vmatprep.subr.bf16.mxu0 0
    %226 = vmatpush1.bf16.msra.mxu0 %v204
    %227 = vmatprep.subr.bf16.mxu0 0
    %228 = vmatpush1.bf16.msra.mxu0 %v203
    %229 = vmatprep.subr.bf16.mxu0 0
    %230 = vmatpush1.bf16.msra.mxu0 %v202
    %231 = vmatprep.subr.bf16.mxu0 0
    %232 = vmatpush1.bf16.msra.mxu0 %v201
    %233 = vmatprep.subr.bf16.mxu0 0
    %234 = vmatpush2.bf16.msra.mxu0 0
    %235 = vmatprep.subr.bf16.mxu0 0
    %236 = vmatpush2.bf16.msra.mxu0 0
    %237 = vmatprep.subr.bf16.mxu0 0
    %238 = vmatpush2.bf16.msra.mxu0 0
    %239 = vmatprep.subr.bf16.mxu0 0
    %240 = vmatpush2.bf16.msra.mxu0 0
    %241 = vmatprep.subr.bf16.mxu0 0
    %242 = vmatpush2.bf16.msra.mxu0 0
    %243 = vmatprep.subr.bf16.mxu0 0
    %244 = vmatpush2.bf16.msra.mxu0 0
    %245 = vmatprep.subr.bf16.mxu0 0
    %246 = vmatpush2.bf16.msra.mxu0 0
    %247 = vmatprep.subr.bf16.mxu0 0
    %248 = vmatpush2.bf16.msra.mxu0 0
    %249 = vmatprep.mubr.bf16.mxu0 0
    %250 = vmatmul.mubr.bf16.gmra.mxu0 %v153
    %v251 = vpop.f32.mrf.mxu0
    %v252 = vadd.f32 0.0, %v251
    %v253 = vpop.f32.mrf.mxu0
    %v254 = vpop.f32.mrf.mxu0
    %v255 = vadd.f32 0.0, %v254
    %v256 = vpop.f32.mrf.mxu0
    %257 = vmatprep.mubr.bf16.mxu0 0
    %258 = vmatmul.mubr.bf16.gmra.mxu0 %v154
    %v259 = vpop.f32.mrf.mxu0
    %v260 = vadd.f32 0.0, %v259
    %v261 = vpop.f32.mrf.mxu0
    %v262 = vpop.f32.mrf.mxu0
    %v263 = vadd.f32 0.0, %v262
    %v264 = vpop.f32.mrf.mxu0
    %265 = vmatprep.mubr.bf16.mxu0 0
    %266 = vmatmul.mubr.bf16.gmra.mxu0 %v155
    %v267 = vpop.f32.mrf.mxu0
    %v268 = vadd.f32 0.0, %v267
    %v269 = vpop.f32.mrf.mxu0
    %v270 = vpop.f32.mrf.mxu0
    %v271 = vadd.f32 0.0, %v270
    %v272 = vpop.f32.mrf.mxu0
    %273 = vmatprep.mubr.bf16.mxu0 0
    %274 = vmatmul.mubr.bf16.gmra.mxu0 %v156
    %v275 = vpop.f32.mrf.mxu0
    %v276 = vadd.f32 0.0, %v275
    %v277 = vpop.f32.mrf.mxu0
    %v278 = vpop.f32.mrf.mxu0
    %v279 = vadd.f32 0.0, %v278
    %v280 = vpop.f32.mrf.mxu0
    %281 = vmatprep.mubr.bf16.mxu0 0
    %282 = vmatmul.mubr.bf16.gmra.mxu0 %v157
    %v283 = vpop.f32.mrf.mxu0
    %v284 = vadd.f32 0.0, %v283
    %v285 = vpop.f32.mrf.mxu0
    %v286 = vpop.f32.mrf.mxu0
    %v287 = vadd.f32 0.0, %v286
    %v288 = vpop.f32.mrf.mxu0
    %289 = vmatprep.mubr.bf16.mxu0 0
    %290 = vmatmul.mubr.bf16.gmra.mxu0 %v158
    %v291 = vpop.f32.mrf.mxu0
    %v292 = vadd.f32 0.0, %v291
    %v293 = vpop.f32.mrf.mxu0
    %v294 = vpop.f32.mrf.mxu0
    %v295 = vadd.f32 0.0, %v294
    %v296 = vpop.f32.mrf.mxu0
    %297 = vmatprep.mubr.bf16.mxu0 0
    %298 = vmatmul.mubr.bf16.gmra.mxu0 %v159
    %v299 = vpop.f32.mrf.mxu0
    %v300 = vadd.f32 0.0, %v299
    %v301 = vpop.f32.mrf.mxu0
    %v302 = vpop.f32.mrf.mxu0
    %v303 = vadd.f32 0.0, %v302
    %v304 = vpop.f32.mrf.mxu0
    %305 = vmatprep.mubr.bf16.mxu0 0
    %306 = vmatmul.mubr.bf16.gmra.mxu0 %v160
    %v307 = vpop.f32.mrf.mxu0
    %v308 = vadd.f32 0.0, %v307
    %v309 = vpop.f32.mrf.mxu0
    %v310 = vpop.f32.mrf.mxu0
    %v311 = vadd.f32 0.0, %v310
    %v312 = vpop.f32.mrf.mxu0
    %313 = vdwg.mxu0
    %v314 = vadd.f32 %v89, %v252
    %v315 = vadd.f32 %v90, %v255
    %v316 = vadd.f32 %v91, %v260
    %v317 = vadd.f32 %v92, %v263
    %v318 = vadd.f32 %v93, %v268
    %v319 = vadd.f32 %v94, %v271
    %v320 = vadd.f32 %v95, %v276
    %v321 = vadd.f32 %v96, %v279
    %v322 = vadd.f32 %v97, %v284
    %v323 = vadd.f32 %v98, %v287
    %v324 = vadd.f32 %v99, %v292
    %v325 = vadd.f32 %v100, %v295
    %v326 = vadd.f32 %v101, %v300
    %v327 = vadd.f32 %v102, %v303
    %v328 = vadd.f32 %v103, %v308
    %v329 = vadd.f32 %v104, %v311
    %330 = vst [vmem:[#allocation2] sm:$0xff] %v314
    %331 = vst [vmem:[#allocation2 + $0x8] sm:$0xff] %v315
    %332 = vst [vmem:[#allocation2 + $0x10] sm:$0xff] %v316
    %333 = vst [vmem:[#allocation2 + $0x18] sm:$0xff] %v317
    %334 = vst [vmem:[#allocation2 + $0x20] sm:$0xff] %v318
    %335 = vst [vmem:[#allocation2 + $0x28] sm:$0xff] %v319
    %336 = vst [vmem:[#allocation2 + $0x30] sm:$0xff] %v320
    %337 = vst [vmem:[#allocation2 + $0x38] sm:$0xff] %v321
    %338 = vst [vmem:[#allocation2 + $0x40] sm:$0xff] %v322
    %339 = vst [vmem:[#allocation2 + $0x48] sm:$0xff] %v323
    %340 = vst [vmem:[#allocation2 + $0x50] sm:$0xff] %v324
    %341 = vst [vmem:[#allocation2 + $0x58] sm:$0xff] %v325
    %342 = vst [vmem:[#allocation2 + $0x60] sm:$0xff] %v326
    %343 = vst [vmem:[#allocation2 + $0x68] sm:$0xff] %v327
    %344 = vst [vmem:[#allocation2 + $0x70] sm:$0xff] %v328
    %345 = vst [vmem:[#allocation2 + $0x78] sm:$0xff] %v329
  $region21: #{lightgcn_forward.5} parent=0 // pred_fallthru
    _
  // Predicated region
  $region22: #{lightgcn_forward.5} parent=0 // pred_check
    %p346 = pneg %p41
  $region23: #{lightgcn_forward.5} parent=0 // pred_check_branch
    %348 = sbr.rel (%p346) target = $region25
  $region24: #{lightgcn_forward.5} parent=0 // pred_region
    %v349 = vld [vmem:[#allocation2] sm:$0xff]
    %v350 = vld [vmem:[#allocation2 + $0x8] sm:$0xff]
    %v351 = vld [vmem:[#allocation2 + $0x10] sm:$0xff]
    %v352 = vld [vmem:[#allocation2 + $0x18] sm:$0xff]
    %v353 = vld [vmem:[#allocation2 + $0x20] sm:$0xff]
    %v354 = vld [vmem:[#allocation2 + $0x28] sm:$0xff]
    %v355 = vld [vmem:[#allocation2 + $0x30] sm:$0xff]
    %v356 = vld [vmem:[#allocation2 + $0x38] sm:$0xff]
    %v357 = vld [vmem:[#allocation2 + $0x40] sm:$0xff]
    %v358 = vld [vmem:[#allocation2 + $0x48] sm:$0xff]
    %v359 = vld [vmem:[#allocation2 + $0x50] sm:$0xff]
    %v360 = vld [vmem:[#allocation2 + $0x58] sm:$0xff]
    %v361 = vld [vmem:[#allocation2 + $0x60] sm:$0xff]
    %v362 = vld [vmem:[#allocation2 + $0x68] sm:$0xff]
    %v363 = vld [vmem:[#allocation2 + $0x70] sm:$0xff]
    %v364 = vld [vmem:[#allocation2 + $0x78] sm:$0xff]
    %v365 = vld [vmem:[%s4] sm:$0xff]
    %v366 = vld [vmem:[%s4 + $0x8] sm:$0xff]
    %v367 = vld [vmem:[%s4 + $0x10] sm:$0xff]
    %v368 = vld [vmem:[%s4 + $0x18] sm:$0xff]
    %v369 = vld [vmem:[%s4 + $0x20] sm:$0xff]
    %v370 = vld [vmem:[%s4 + $0x28] sm:$0xff]
    %v371 = vld [vmem:[%s4 + $0x30] sm:$0xff]
    %v372 = vld [vmem:[%s4 + $0x38] sm:$0xff]
    %v373 = vld [vmem:[%s4 + $0x40] sm:$0xff]
    %v374 = vld [vmem:[%s4 + $0x48] sm:$0xff]
    %v375 = vld [vmem:[%s4 + $0x50] sm:$0xff]
    %v376 = vld [vmem:[%s4 + $0x58] sm:$0xff]
    %v377 = vld [vmem:[%s4 + $0x60] sm:$0xff]
    %v378 = vld [vmem:[%s4 + $0x68] sm:$0xff]
    %v379 = vld [vmem:[%s4 + $0x70] sm:$0xff]
    %v380 = vld [vmem:[%s4 + $0x78] sm:$0xff]
    %v381 = vadd.f32 %v349, %v365
    %v382 = vadd.f32 %v350, %v366
    %v383 = vadd.f32 %v351, %v367
    %v384 = vadd.f32 %v352, %v368
    %v385 = vadd.f32 %v353, %v369
    %v386 = vadd.f32 %v354, %v370
    %v387 = vadd.f32 %v355, %v371
    %v388 = vadd.f32 %v356, %v372
    %v389 = vadd.f32 %v357, %v373
    %v390 = vadd.f32 %v358, %v374
    %v391 = vadd.f32 %v359, %v375
    %v392 = vadd.f32 %v360, %v376
    %v393 = vadd.f32 %v361, %v377
    %v394 = vadd.f32 %v362, %v378
    %v395 = vadd.f32 %v363, %v379
    %v396 = vadd.f32 %v364, %v380
    %v397 = vmul.f32 %v381, 0.25
    %v398 = vmul.f32 %v382, 0.25
    %v399 = vmul.f32 %v383, 0.25
    %v400 = vmul.f32 %v384, 0.25
    %v401 = vmul.f32 %v385, 0.25
    %v402 = vmul.f32 %v386, 0.25
    %v403 = vmul.f32 %v387, 0.25
    %v404 = vmul.f32 %v388, 0.25
    %v405 = vmul.f32 %v389, 0.25
    %v406 = vmul.f32 %v390, 0.25
    %v407 = vmul.f32 %v391, 0.25
    %v408 = vmul.f32 %v392, 0.25
    %v409 = vmul.f32 %v393, 0.25
    %v410 = vmul.f32 %v394, 0.25
    %v411 = vmul.f32 %v395, 0.25
    %v412 = vmul.f32 %v396, 0.25
    %413 = vst [vmem:[%s5] sm:$0xff] %v397
    %414 = vst [vmem:[%s5 + $0x8] sm:$0xff] %v398
    %415 = vst [vmem:[%s5 + $0x10] sm:$0xff] %v399
    %416 = vst [vmem:[%s5 + $0x18] sm:$0xff] %v400
    %417 = vst [vmem:[%s5 + $0x20] sm:$0xff] %v401
    %418 = vst [vmem:[%s5 + $0x28] sm:$0xff] %v402
    %419 = vst [vmem:[%s5 + $0x30] sm:$0xff] %v403
    %420 = vst [vmem:[%s5 + $0x38] sm:$0xff] %v404
    %421 = vst [vmem:[%s5 + $0x40] sm:$0xff] %v405
    %422 = vst [vmem:[%s5 + $0x48] sm:$0xff] %v406
    %423 = vst [vmem:[%s5 + $0x50] sm:$0xff] %v407
    %424 = vst [vmem:[%s5 + $0x58] sm:$0xff] %v408
    %425 = vst [vmem:[%s5 + $0x60] sm:$0xff] %v409
    %426 = vst [vmem:[%s5 + $0x68] sm:$0xff] %v410
    %427 = vst [vmem:[%s5 + $0x70] sm:$0xff] %v411
    %428 = vst [vmem:[%s5 + $0x78] sm:$0xff] %v412
  $region25: #{lightgcn_forward.5} parent=0 // pred_fallthru
    _
  // Predicated region
  $region26: #{lightgcn_forward.5} parent=0 // pred_check
    _
  $region27: #{lightgcn_forward.5} parent=0 // pred_check_branch
    %430 = sbr.rel (0) target = $region29
  $region28: #{lightgcn_forward.5} parent=0 // pred_region
    _
  $region29: #{lightgcn_forward.5} parent=0 // pred_fallthru
    _
  // Predicated region
  $region30: #{lightgcn_forward.5} parent=0 // pred_check
    _
  $region31: #{lightgcn_forward.5} parent=0 // pred_check_branch
    %432 = sbr.rel (0) target = $region33
  $region32: #{lightgcn_forward.5} parent=0 // pred_region
    _
  $region33: #{lightgcn_forward.5} parent=0 // pred_fallthru
    _

// kernel: lightgcn_forward.3
$region0: #{lightgcn_forward.3}
  #allocation0 [shape = 'u32[]', space=smem, size = 0x4, offset = 0x4, fixed_abs, tag = 'smem constant byte address 0x4 - core index']
  #allocation1 [shape = 'u32[144,128]{1,0:T(1,128)}', space=vmem, size = 0x12000, scoped, tag = 'internal scratch']
  #allocation2 [shape = 'f32[128,128]{1,0:T(8,128)}', space=vmem, size = 0x10000, scoped, tag = 'scratch operand']
  #allocation3 [shape = 's32[1]{0}', space=sflag, size = 0x4, scoped, tag = 'scoped memory for lightgcn_forward.3']
  #allocation4 [shape = 's32[1]{0:T(128)S(6)}', space=smem, size = 0x200, scoped, tag = 'prefetched SMEM operand 0']
  #allocation5 [shape = 's32[1]{0:T(128)S(6)}', space=smem, size = 0x200, scoped, tag = 'prefetched SMEM operand 1']
  %s0 = inlined_call_operand.<no memory space> [shape: s32[1], index: 0, kind: input, shape index: {}]
  %s1 = inlined_call_operand.<no memory space> [shape: s32[1], index: 1, kind: input, shape index: {}]
  %s2 = inlined_call_operand.vmem [shape: bf16[128,128], index: 2, kind: input, shape index: {}]
  %s3 = inlined_call_operand.vmem [shape: bf16[128,128], index: 3, kind: input, shape index: {}]
  %s4 = inlined_call_operand.vmem [shape: f32[128,128], index: 4, kind: input, shape index: {}]
  %s5 = inlined_call_operand.vmem [shape: bf16[128,128], index: 5, kind: output, shape index: {}]
  %s6 = sld [smem:[#allocation0]]
  $region34: #{lightgcn_forward.3} parent=0
    _
  %s8 = ssub.s32 1, %s6
  %s9 = scalar_select 0, %s8, %s6
  %10 = sst [smem:[#allocation4]] %s0
  %11 = sst [smem:[#allocation5]] %s1
  // Predicated region
  $region2: #{lightgcn_forward.3} parent=0 // pred_check
    _
  $region3: #{lightgcn_forward.3} parent=0 // pred_check_branch
    %13 = sbr.rel (0) target = $region5
  $region4: #{lightgcn_forward.3} parent=0 // pred_region
    %s14 = sadd.s32 0, 0
    %s15 = sld [smem:[#allocation4 + %s14]]
    %p16 = scmp.lt.s32.totalorder %s15, 0
    %s17 = scalar_select %p16, %s15, 0
    %s18 = smul.addr %s17, 4
    %s19 = scalar_lea.vmem %s2, %s18
    %s20 = sadd.s32 0, 0
    %s21 = sld [smem:[#allocation4 + %s20]]
  $region5: #{lightgcn_forward.3} parent=0 // pred_fallthru
    _
  // Predicated region
  $region6: #{lightgcn_forward.3} parent=0 // pred_check
    _
  $region7: #{lightgcn_forward.3} parent=0 // pred_check_branch
    %23 = sbr.rel (0) target = $region9
  $region8: #{lightgcn_forward.3} parent=0 // pred_region
    _
  $region9: #{lightgcn_forward.3} parent=0 // pred_fallthru
    _
  // Predicated region
  $region10: #{lightgcn_forward.3} parent=0 // pred_check
    _
  $region11: #{lightgcn_forward.3} parent=0 // pred_check_branch
    %25 = sbr.rel (0) target = $region13
  $region12: #{lightgcn_forward.3} parent=0 // pred_region
    _
  $region13: #{lightgcn_forward.3} parent=0 // pred_fallthru
    _
  %s26 = sadd.s32 0, 0
  %s27 = sld [smem:[#allocation4 + %s26]]
  %p28 = scmp.lt.s32.totalorder %s27, 0
  %s29 = scalar_select %p28, %s27, 0
  %s30 = smul.addr %s29, 4
  %s31 = scalar_lea.vmem %s2, %s30
  %s32 = sadd.s32 0, 0
  %s33 = sld [smem:[#allocation4 + %s32]]
  %p34 = scmp.lt.s32.totalorder %s33, 0
  %s35 = scalar_select %p34, %s33, 0
  %s36 = smul.addr %s35, 4
  %s37 = scalar_lea.vmem %s2, %s36
  %s38 = sadd.s32 0, 0
  %s39 = sld [smem:[#allocation4 + %s38]]
  %p41 = scmp.eq.s32.totalorder 0, 0
  // Predicated region
  $region14: #{lightgcn_forward.3} parent=0 // pred_check
    %p42 = pneg %p41
  $region15: #{lightgcn_forward.3} parent=0 // pred_check_branch
    %44 = sbr.rel (%p42) target = $region17
  $region16: #{lightgcn_forward.3} parent=0 // pred_region
    %45 = vst [vmem:[#allocation2] sm:$0xff] 0.0
    %46 = vst [vmem:[#allocation2 + $0x8] sm:$0xff] 0.0
    %47 = vst [vmem:[#allocation2 + $0x10] sm:$0xff] 0.0
    %48 = vst [vmem:[#allocation2 + $0x18] sm:$0xff] 0.0
    %49 = vst [vmem:[#allocation2 + $0x20] sm:$0xff] 0.0
    %50 = vst [vmem:[#allocation2 + $0x28] sm:$0xff] 0.0
    %51 = vst [vmem:[#allocation2 + $0x30] sm:$0xff] 0.0
    %52 = vst [vmem:[#allocation2 + $0x38] sm:$0xff] 0.0
    %53 = vst [vmem:[#allocation2 + $0x40] sm:$0xff] 0.0
    %54 = vst [vmem:[#allocation2 + $0x48] sm:$0xff] 0.0
    %55 = vst [vmem:[#allocation2 + $0x50] sm:$0xff] 0.0
    %56 = vst [vmem:[#allocation2 + $0x58] sm:$0xff] 0.0
    %57 = vst [vmem:[#allocation2 + $0x60] sm:$0xff] 0.0
    %58 = vst [vmem:[#allocation2 + $0x68] sm:$0xff] 0.0
    %59 = vst [vmem:[#allocation2 + $0x70] sm:$0xff] 0.0
    %60 = vst [vmem:[#allocation2 + $0x78] sm:$0xff] 0.0
  $region17: #{lightgcn_forward.3} parent=0 // pred_fallthru
    _
  %s61 = sld [smem:[#allocation5]]
  %p62 = scmp.lt.s32.totalorder 0, %s61
  // Predicated region
  $region18: #{lightgcn_forward.3} parent=0 // pred_check
    %p63 = pneg %p62
  $region19: #{lightgcn_forward.3} parent=0 // pred_check_branch
    %65 = sbr.rel (%p63) target = $region21
  $region20: #{lightgcn_forward.3} parent=0 // pred_region
    %s66 = sadd.s32 0, 0
    %s67 = sld [smem:[#allocation4 + %s66]]
    %s68 = smul.u32 %s67, 128
    %s69 = sshra.s32 %s68, 3
    %s70 = sand.u32 %s68, 7
    %s71 = smul.addr %s69, 4
    %s72 = scalar_lea.vmem %s3, %s71
    %v73 = vld [vmem:[%s72] sm:$0xf]
    %v74 = vld [vmem:[%s72 + $0x4] sm:$0xf]
    %v75 = vld [vmem:[%s72 + $0x8] sm:$0xf]
    %v76 = vld [vmem:[%s72 + $0xc] sm:$0xf]
    %v77 = vld [vmem:[%s72 + $0x10] sm:$0xf]
    %v78 = vld [vmem:[%s72 + $0x14] sm:$0xf]
    %v79 = vld [vmem:[%s72 + $0x18] sm:$0xf]
    %v80 = vld [vmem:[%s72 + $0x1c] sm:$0xf]
    %v81 = vld [vmem:[%s72 + $0x20] sm:$0xf]
    %v82 = vld [vmem:[%s72 + $0x24] sm:$0xf]
    %v83 = vld [vmem:[%s72 + $0x28] sm:$0xf]
    %v84 = vld [vmem:[%s72 + $0x2c] sm:$0xf]
    %v85 = vld [vmem:[%s72 + $0x30] sm:$0xf]
    %v86 = vld [vmem:[%s72 + $0x34] sm:$0xf]
    %v87 = vld [vmem:[%s72 + $0x38] sm:$0xf]
    %v88 = vld [vmem:[%s72 + $0x3c] sm:$0xf]
    %v89 = vld [vmem:[#allocation2] sm:$0xff]
    %v90 = vld [vmem:[#allocation2 + $0x8] sm:$0xff]
    %v91 = vld [vmem:[#allocation2 + $0x10] sm:$0xff]
    %v92 = vld [vmem:[#allocation2 + $0x18] sm:$0xff]
    %v93 = vld [vmem:[#allocation2 + $0x20] sm:$0xff]
    %v94 = vld [vmem:[#allocation2 + $0x28] sm:$0xff]
    %v95 = vld [vmem:[#allocation2 + $0x30] sm:$0xff]
    %v96 = vld [vmem:[#allocation2 + $0x38] sm:$0xff]
    %v97 = vld [vmem:[#allocation2 + $0x40] sm:$0xff]
    %v98 = vld [vmem:[#allocation2 + $0x48] sm:$0xff]
    %v99 = vld [vmem:[#allocation2 + $0x50] sm:$0xff]
    %v100 = vld [vmem:[#allocation2 + $0x58] sm:$0xff]
    %v101 = vld [vmem:[#allocation2 + $0x60] sm:$0xff]
    %v102 = vld [vmem:[#allocation2 + $0x68] sm:$0xff]
    %v103 = vld [vmem:[#allocation2 + $0x70] sm:$0xff]
    %v104 = vld [vmem:[#allocation2 + $0x78] sm:$0xff]
    %v105 = vld [vmem:[%s37] sm:$0xf]
    %v106 = vld [vmem:[%s37 + $0x4] sm:$0xf]
    %v107 = vld [vmem:[%s37 + $0x8] sm:$0xf]
    %v108 = vld [vmem:[%s37 + $0xc] sm:$0xf]
    %v109 = vld [vmem:[%s37 + $0x10] sm:$0xf]
    %v110 = vld [vmem:[%s37 + $0x14] sm:$0xf]
    %v111 = vld [vmem:[%s37 + $0x18] sm:$0xf]
    %v112 = vld [vmem:[%s37 + $0x1c] sm:$0xf]
    %v113 = vld [vmem:[%s37 + $0x20] sm:$0xf]
    %v114 = vld [vmem:[%s37 + $0x24] sm:$0xf]
    %v115 = vld [vmem:[%s37 + $0x28] sm:$0xf]
    %v116 = vld [vmem:[%s37 + $0x2c] sm:$0xf]
    %v117 = vld [vmem:[%s37 + $0x30] sm:$0xf]
    %v118 = vld [vmem:[%s37 + $0x34] sm:$0xf]
    %v119 = vld [vmem:[%s37 + $0x38] sm:$0xf]
    %v120 = vld [vmem:[%s37 + $0x3c] sm:$0xf]
    %v137 = vunpack.c.l.b16 %v105
    %v138 = vunpack.c.l.b16 %v106
    %v139 = vunpack.c.l.b16 %v107
    %v140 = vunpack.c.l.b16 %v108
    %v141 = vunpack.c.l.b16 %v109
    %v142 = vunpack.c.l.b16 %v110
    %v143 = vunpack.c.l.b16 %v111
    %v144 = vunpack.c.l.b16 %v112
    %v145 = vunpack.c.l.b16 %v113
    %v146 = vunpack.c.l.b16 %v114
    %v147 = vunpack.c.l.b16 %v115
    %v148 = vunpack.c.l.b16 %v116
    %v149 = vunpack.c.l.b16 %v117
    %v150 = vunpack.c.l.b16 %v118
    %v151 = vunpack.c.l.b16 %v119
    %v152 = vunpack.c.l.b16 %v120
    %v153 = vpack.c.b16 %v138, %v137
    %v154 = vpack.c.b16 %v140, %v139
    %v155 = vpack.c.b16 %v142, %v141
    %v156 = vpack.c.b16 %v144, %v143
    %v157 = vpack.c.b16 %v146, %v145
    %v158 = vpack.c.b16 %v148, %v147
    %v159 = vpack.c.b16 %v150, %v149
    %v160 = vpack.c.b16 %v152, %v151
    %v185 = vunpack.c.l.b16 %v73
    %v186 = vunpack.c.l.b16 %v74
    %v187 = vunpack.c.l.b16 %v75
    %v188 = vunpack.c.l.b16 %v76
    %v189 = vunpack.c.l.b16 %v77
    %v190 = vunpack.c.l.b16 %v78
    %v191 = vunpack.c.l.b16 %v79
    %v192 = vunpack.c.l.b16 %v80
    %v193 = vunpack.c.l.b16 %v81
    %v194 = vunpack.c.l.b16 %v82
    %v195 = vunpack.c.l.b16 %v83
    %v196 = vunpack.c.l.b16 %v84
    %v197 = vunpack.c.l.b16 %v85
    %v198 = vunpack.c.l.b16 %v86
    %v199 = vunpack.c.l.b16 %v87
    %v200 = vunpack.c.l.b16 %v88
    %v201 = vpack.c.b16 %v186, %v185
    %v202 = vpack.c.b16 %v188, %v187
    %v203 = vpack.c.b16 %v190, %v189
    %v204 = vpack.c.b16 %v192, %v191
    %v205 = vpack.c.b16 %v194, %v193
    %v206 = vpack.c.b16 %v196, %v195
    %v207 = vpack.c.b16 %v198, %v197
    %v208 = vpack.c.b16 %v200, %v199
    %217 = vmatprep.subr.bf16.mxu0 0
    %218 = vmatpush1.bf16.msra.mxu0 %v208
    %219 = vmatprep.subr.bf16.mxu0 0
    %220 = vmatpush1.bf16.msra.mxu0 %v207
    %221 = vmatprep.subr.bf16.mxu0 0
    %222 = vmatpush1.bf16.msra.mxu0 %v206
    %223 = vmatprep.subr.bf16.mxu0 0
    %224 = vmatpush1.bf16.msra.mxu0 %v205
    %225 = vmatprep.subr.bf16.mxu0 0
    %226 = vmatpush1.bf16.msra.mxu0 %v204
    %227 = vmatprep.subr.bf16.mxu0 0
    %228 = vmatpush1.bf16.msra.mxu0 %v203
    %229 = vmatprep.subr.bf16.mxu0 0
    %230 = vmatpush1.bf16.msra.mxu0 %v202
    %231 = vmatprep.subr.bf16.mxu0 0
    %232 = vmatpush1.bf16.msra.mxu0 %v201
    %233 = vmatprep.subr.bf16.mxu0 0
    %234 = vmatpush2.bf16.msra.mxu0 0
    %235 = vmatprep.subr.bf16.mxu0 0
    %236 = vmatpush2.bf16.msra.mxu0 0
    %237 = vmatprep.subr.bf16.mxu0 0
    %238 = vmatpush2.bf16.msra.mxu0 0
    %239 = vmatprep.subr.bf16.mxu0 0
    %240 = vmatpush2.bf16.msra.mxu0 0
    %241 = vmatprep.subr.bf16.mxu0 0
    %242 = vmatpush2.bf16.msra.mxu0 0
    %243 = vmatprep.subr.bf16.mxu0 0
    %244 = vmatpush2.bf16.msra.mxu0 0
    %245 = vmatprep.subr.bf16.mxu0 0
    %246 = vmatpush2.bf16.msra.mxu0 0
    %247 = vmatprep.subr.bf16.mxu0 0
    %248 = vmatpush2.bf16.msra.mxu0 0
    %249 = vmatprep.mubr.bf16.mxu0 0
    %250 = vmatmul.mubr.bf16.gmra.mxu0 %v153
    %v251 = vpop.f32.mrf.mxu0
    %v252 = vadd.f32 0.0, %v251
    %v253 = vpop.f32.mrf.mxu0
    %v254 = vpop.f32.mrf.mxu0
    %v255 = vadd.f32 0.0, %v254
    %v256 = vpop.f32.mrf.mxu0
    %257 = vmatprep.mubr.bf16.mxu0 0
    %258 = vmatmul.mubr.bf16.gmra.mxu0 %v154
    %v259 = vpop.f32.mrf.mxu0
    %v260 = vadd.f32 0.0, %v259
    %v261 = vpop.f32.mrf.mxu0
    %v262 = vpop.f32.mrf.mxu0
    %v263 = vadd.f32 0.0, %v262
    %v264 = vpop.f32.mrf.mxu0
    %265 = vmatprep.mubr.bf16.mxu0 0
    %266 = vmatmul.mubr.bf16.gmra.mxu0 %v155
    %v267 = vpop.f32.mrf.mxu0
    %v268 = vadd.f32 0.0, %v267
    %v269 = vpop.f32.mrf.mxu0
    %v270 = vpop.f32.mrf.mxu0
    %v271 = vadd.f32 0.0, %v270
    %v272 = vpop.f32.mrf.mxu0
    %273 = vmatprep.mubr.bf16.mxu0 0
    %274 = vmatmul.mubr.bf16.gmra.mxu0 %v156
    %v275 = vpop.f32.mrf.mxu0
    %v276 = vadd.f32 0.0, %v275
    %v277 = vpop.f32.mrf.mxu0
    %v278 = vpop.f32.mrf.mxu0
    %v279 = vadd.f32 0.0, %v278
    %v280 = vpop.f32.mrf.mxu0
    %281 = vmatprep.mubr.bf16.mxu0 0
    %282 = vmatmul.mubr.bf16.gmra.mxu0 %v157
    %v283 = vpop.f32.mrf.mxu0
    %v284 = vadd.f32 0.0, %v283
    %v285 = vpop.f32.mrf.mxu0
    %v286 = vpop.f32.mrf.mxu0
    %v287 = vadd.f32 0.0, %v286
    %v288 = vpop.f32.mrf.mxu0
    %289 = vmatprep.mubr.bf16.mxu0 0
    %290 = vmatmul.mubr.bf16.gmra.mxu0 %v158
    %v291 = vpop.f32.mrf.mxu0
    %v292 = vadd.f32 0.0, %v291
    %v293 = vpop.f32.mrf.mxu0
    %v294 = vpop.f32.mrf.mxu0
    %v295 = vadd.f32 0.0, %v294
    %v296 = vpop.f32.mrf.mxu0
    %297 = vmatprep.mubr.bf16.mxu0 0
    %298 = vmatmul.mubr.bf16.gmra.mxu0 %v159
    %v299 = vpop.f32.mrf.mxu0
    %v300 = vadd.f32 0.0, %v299
    %v301 = vpop.f32.mrf.mxu0
    %v302 = vpop.f32.mrf.mxu0
    %v303 = vadd.f32 0.0, %v302
    %v304 = vpop.f32.mrf.mxu0
    %305 = vmatprep.mubr.bf16.mxu0 0
    %306 = vmatmul.mubr.bf16.gmra.mxu0 %v160
    %v307 = vpop.f32.mrf.mxu0
    %v308 = vadd.f32 0.0, %v307
    %v309 = vpop.f32.mrf.mxu0
    %v310 = vpop.f32.mrf.mxu0
    %v311 = vadd.f32 0.0, %v310
    %v312 = vpop.f32.mrf.mxu0
    %313 = vdwg.mxu0
    %v314 = vadd.f32 %v89, %v252
    %v315 = vadd.f32 %v90, %v255
    %v316 = vadd.f32 %v91, %v260
    %v317 = vadd.f32 %v92, %v263
    %v318 = vadd.f32 %v93, %v268
    %v319 = vadd.f32 %v94, %v271
    %v320 = vadd.f32 %v95, %v276
    %v321 = vadd.f32 %v96, %v279
    %v322 = vadd.f32 %v97, %v284
    %v323 = vadd.f32 %v98, %v287
    %v324 = vadd.f32 %v99, %v292
    %v325 = vadd.f32 %v100, %v295
    %v326 = vadd.f32 %v101, %v300
    %v327 = vadd.f32 %v102, %v303
    %v328 = vadd.f32 %v103, %v308
    %v329 = vadd.f32 %v104, %v311
    %330 = vst [vmem:[#allocation2] sm:$0xff] %v314
    %331 = vst [vmem:[#allocation2 + $0x8] sm:$0xff] %v315
    %332 = vst [vmem:[#allocation2 + $0x10] sm:$0xff] %v316
    %333 = vst [vmem:[#allocation2 + $0x18] sm:$0xff] %v317
    %334 = vst [vmem:[#allocation2 + $0x20] sm:$0xff] %v318
    %335 = vst [vmem:[#allocation2 + $0x28] sm:$0xff] %v319
    %336 = vst [vmem:[#allocation2 + $0x30] sm:$0xff] %v320
    %337 = vst [vmem:[#allocation2 + $0x38] sm:$0xff] %v321
    %338 = vst [vmem:[#allocation2 + $0x40] sm:$0xff] %v322
    %339 = vst [vmem:[#allocation2 + $0x48] sm:$0xff] %v323
    %340 = vst [vmem:[#allocation2 + $0x50] sm:$0xff] %v324
    %341 = vst [vmem:[#allocation2 + $0x58] sm:$0xff] %v325
    %342 = vst [vmem:[#allocation2 + $0x60] sm:$0xff] %v326
    %343 = vst [vmem:[#allocation2 + $0x68] sm:$0xff] %v327
    %344 = vst [vmem:[#allocation2 + $0x70] sm:$0xff] %v328
    %345 = vst [vmem:[#allocation2 + $0x78] sm:$0xff] %v329
  $region21: #{lightgcn_forward.3} parent=0 // pred_fallthru
    _
  // Predicated region
  $region22: #{lightgcn_forward.3} parent=0 // pred_check
    %p346 = pneg %p41
  $region23: #{lightgcn_forward.3} parent=0 // pred_check_branch
    %348 = sbr.rel (%p346) target = $region25
  $region24: #{lightgcn_forward.3} parent=0 // pred_region
    %v349 = vld [vmem:[#allocation2] sm:$0xff]
    %v350 = vld [vmem:[#allocation2 + $0x8] sm:$0xff]
    %v351 = vld [vmem:[#allocation2 + $0x10] sm:$0xff]
    %v352 = vld [vmem:[#allocation2 + $0x18] sm:$0xff]
    %v353 = vld [vmem:[#allocation2 + $0x20] sm:$0xff]
    %v354 = vld [vmem:[#allocation2 + $0x28] sm:$0xff]
    %v355 = vld [vmem:[#allocation2 + $0x30] sm:$0xff]
    %v356 = vld [vmem:[#allocation2 + $0x38] sm:$0xff]
    %v357 = vld [vmem:[#allocation2 + $0x40] sm:$0xff]
    %v358 = vld [vmem:[#allocation2 + $0x48] sm:$0xff]
    %v359 = vld [vmem:[#allocation2 + $0x50] sm:$0xff]
    %v360 = vld [vmem:[#allocation2 + $0x58] sm:$0xff]
    %v361 = vld [vmem:[#allocation2 + $0x60] sm:$0xff]
    %v362 = vld [vmem:[#allocation2 + $0x68] sm:$0xff]
    %v363 = vld [vmem:[#allocation2 + $0x70] sm:$0xff]
    %v364 = vld [vmem:[#allocation2 + $0x78] sm:$0xff]
    %v365 = vld [vmem:[%s4] sm:$0xff]
    %v366 = vld [vmem:[%s4 + $0x8] sm:$0xff]
    %v367 = vld [vmem:[%s4 + $0x10] sm:$0xff]
    %v368 = vld [vmem:[%s4 + $0x18] sm:$0xff]
    %v369 = vld [vmem:[%s4 + $0x20] sm:$0xff]
    %v370 = vld [vmem:[%s4 + $0x28] sm:$0xff]
    %v371 = vld [vmem:[%s4 + $0x30] sm:$0xff]
    %v372 = vld [vmem:[%s4 + $0x38] sm:$0xff]
    %v373 = vld [vmem:[%s4 + $0x40] sm:$0xff]
    %v374 = vld [vmem:[%s4 + $0x48] sm:$0xff]
    %v375 = vld [vmem:[%s4 + $0x50] sm:$0xff]
    %v376 = vld [vmem:[%s4 + $0x58] sm:$0xff]
    %v377 = vld [vmem:[%s4 + $0x60] sm:$0xff]
    %v378 = vld [vmem:[%s4 + $0x68] sm:$0xff]
    %v379 = vld [vmem:[%s4 + $0x70] sm:$0xff]
    %v380 = vld [vmem:[%s4 + $0x78] sm:$0xff]
    %v381 = vadd.f32 %v349, %v365
    %v382 = vadd.f32 %v350, %v366
    %v383 = vadd.f32 %v351, %v367
    %v384 = vadd.f32 %v352, %v368
    %v385 = vadd.f32 %v353, %v369
    %v386 = vadd.f32 %v354, %v370
    %v387 = vadd.f32 %v355, %v371
    %v388 = vadd.f32 %v356, %v372
    %v389 = vadd.f32 %v357, %v373
    %v390 = vadd.f32 %v358, %v374
    %v391 = vadd.f32 %v359, %v375
    %v392 = vadd.f32 %v360, %v376
    %v393 = vadd.f32 %v361, %v377
    %v394 = vadd.f32 %v362, %v378
    %v395 = vadd.f32 %v363, %v379
    %v396 = vadd.f32 %v364, %v380
    %v397 = vpack.c.bf16 %v382, %v381
    %v398 = vpack.c.bf16 %v384, %v383
    %v399 = vpack.c.bf16 %v386, %v385
    %v400 = vpack.c.bf16 %v388, %v387
    %v401 = vpack.c.bf16 %v390, %v389
    %v402 = vpack.c.bf16 %v392, %v391
    %v403 = vpack.c.bf16 %v394, %v393
    %v404 = vpack.c.bf16 %v396, %v395
    %v413 = vunpack.c.l.b16 %v397
    %v414 = vunpack.c.h.b16 %v397
    %v415 = vunpack.c.l.b16 %v398
    %v416 = vunpack.c.h.b16 %v398
    %v417 = vunpack.c.l.b16 %v399
    %v418 = vunpack.c.h.b16 %v399
    %v419 = vunpack.c.l.b16 %v400
    %v420 = vunpack.c.h.b16 %v400
    %v421 = vunpack.c.l.b16 %v401
    %v422 = vunpack.c.h.b16 %v401
    %v423 = vunpack.c.l.b16 %v402
    %v424 = vunpack.c.h.b16 %v402
    %v425 = vunpack.c.l.b16 %v403
    %v426 = vunpack.c.h.b16 %v403
    %v427 = vunpack.c.l.b16 %v404
    %v428 = vunpack.c.h.b16 %v404
    %v429 = vpack.c.b16 %v413, %v413
    %v430 = vpack.c.b16 %v414, %v414
    %v431 = vpack.c.b16 %v415, %v415
    %v432 = vpack.c.b16 %v416, %v416
    %v433 = vpack.c.b16 %v417, %v417
    %v434 = vpack.c.b16 %v418, %v418
    %v435 = vpack.c.b16 %v419, %v419
    %v436 = vpack.c.b16 %v420, %v420
    %v437 = vpack.c.b16 %v421, %v421
    %v438 = vpack.c.b16 %v422, %v422
    %v439 = vpack.c.b16 %v423, %v423
    %v440 = vpack.c.b16 %v424, %v424
    %v441 = vpack.c.b16 %v425, %v425
    %v442 = vpack.c.b16 %v426, %v426
    %v443 = vpack.c.b16 %v427, %v427
    %v444 = vpack.c.b16 %v428, %v428
    %461 = vst [vmem:[%s5] sm:$0xf] %v429
    %462 = vst [vmem:[%s5 + $0x4] sm:$0xf] %v430
    %463 = vst [vmem:[%s5 + $0x8] sm:$0xf] %v431
    %464 = vst [vmem:[%s5 + $0xc] sm:$0xf] %v432
    %465 = vst [vmem:[%s5 + $0x10] sm:$0xf] %v433
    %466 = vst [vmem:[%s5 + $0x14] sm:$0xf] %v434
    %467 = vst [vmem:[%s5 + $0x18] sm:$0xf] %v435
    %468 = vst [vmem:[%s5 + $0x1c] sm:$0xf] %v436
    %469 = vst [vmem:[%s5 + $0x20] sm:$0xf] %v437
    %470 = vst [vmem:[%s5 + $0x24] sm:$0xf] %v438
    %471 = vst [vmem:[%s5 + $0x28] sm:$0xf] %v439
    %472 = vst [vmem:[%s5 + $0x2c] sm:$0xf] %v440
    %473 = vst [vmem:[%s5 + $0x30] sm:$0xf] %v441
    %474 = vst [vmem:[%s5 + $0x34] sm:$0xf] %v442
    %475 = vst [vmem:[%s5 + $0x38] sm:$0xf] %v443
    %476 = vst [vmem:[%s5 + $0x3c] sm:$0xf] %v444
  $region25: #{lightgcn_forward.3} parent=0 // pred_fallthru
    _
  // Predicated region
  $region26: #{lightgcn_forward.3} parent=0 // pred_check
    _
  $region27: #{lightgcn_forward.3} parent=0 // pred_check_branch
    %478 = sbr.rel (0) target = $region29
  $region28: #{lightgcn_forward.3} parent=0 // pred_region
    _
  $region29: #{lightgcn_forward.3} parent=0 // pred_fallthru
    _
  // Predicated region
  $region30: #{lightgcn_forward.3} parent=0 // pred_check
    _
  $region31: #{lightgcn_forward.3} parent=0 // pred_check_branch
    %480 = sbr.rel (0) target = $region33
  $region32: #{lightgcn_forward.3} parent=0 // pred_region
    _
  $region33: #{lightgcn_forward.3} parent=0 // pred_fallthru
    _

</llo_original>
